<compile_context>
chip_gen: v6e
topology: v6e:2x2x1
jax: 0.10.0
libtpu: 0.0.40
codegen_flags: <defaults>
</compile_context>

<pallas_src>
import jax
import jax.numpy as jnp
from jax.experimental import pallas as pl
from jax.experimental.pallas import tpu as pltpu


def _round_up(a: int, b: int) -> int:
    return ((a + b - 1) // b) * b


def _fused_bn_relu_kernel(x_ref, scale_ref, shift_ref, o_ref):
    # x_ref:     (ROW_TILE, LANE_TILE)  input tile
    # scale_ref: (ROW_TILE, 1)          per-row scale (f32, or bf16 for bf16 x)
    # shift_ref: (ROW_TILE, 1)          per-row shift (same dtype as scale)
    x = x_ref[...].astype(scale_ref.dtype)
    y = x * scale_ref[...] + shift_ref[...]
    o_ref[...] = jnp.maximum(y, 0).astype(o_ref.dtype)


def _choose_tiles(rows: int, hw: int, itemsize: int, sub: int):
    """Pick (row_tile, lane_tile) targeting ~4 MiB input tiles."""
    target = 4 << 20                      # ~4 MiB input tile
    row_bytes = hw * itemsize             # bytes of one full-width row

    if row_bytes * sub <= target:
        # Full-width lane tile; tile along rows only (contiguous DMAs).
        lane_tile = hw
        max_row_tile = max(sub, (target // row_bytes) // sub * sub)
        if rows <= max_row_tile:
            if rows >= 2 * sub:
                # Whole tensor fits one tile: still split rows into >=2 tiles
                # so v7x's two TensorCores both get work.
                row_tile = min(max_row_tile, _round_up(pl.cdiv(rows, 2), sub))
            else:
                row_tile = rows           # block dim == full array dim
        else:
            row_tile = max_row_tile
    else:
        # H*W is enormous: split the lane axis too (multiples of 128,
        # masked tail lane tile).
        row_tile = sub if rows >= sub else rows
        lane_budget = max(128, (target // (max(row_tile, 1) * itemsize)) // 128 * 128)
        lane_tile = min(_round_up(hw, 128), lane_budget)
    return row_tile, lane_tile


def fused_bn_relu(x, weight, bias, running_mean, running_var, eps=1e-5):
    """Inference-mode fused BN + ReLU. x is NCHW (f32 or bf16)."""
    N, C, H, W = x.shape
    HW = H * W
    rows = N * C
    itemsize = jnp.dtype(x.dtype).itemsize

    # Fold BN parameters in f32 (cheap, once, outside the kernel).
    scale = weight.astype(jnp.float32) / jnp.sqrt(
        running_var.astype(jnp.float32) + jnp.float32(eps))
    shift = bias.astype(jnp.float32) - running_mean.astype(jnp.float32) * scale

    # Compute dtype: bf16-native math for bf16 inputs (v6e/v7x bf16 VALU;
    # emulated-but-correct on v5e), f32 otherwise.
    param_dtype = jnp.bfloat16 if x.dtype == jnp.bfloat16 else jnp.float32

    # Per-row (N*C) parameters; row = n*C + c matches NCHW layout.
    scale_rows = jnp.tile(scale, (N,)).astype(param_dtype).reshape(rows, 1)
    shift_rows = jnp.tile(shift, (N,)).astype(param_dtype).reshape(rows, 1)

    x2 = x.reshape(rows, HW)              # no padding, no extra HBM traffic

    # Sublane packing multiple depends on dtype width.
    sub = {4: 8, 2: 16, 1: 32}.get(itemsize, 8)

    ROW_TILE, LANE_TILE = _choose_tiles(rows, HW, itemsize, sub)
    grid = (pl.cdiv(rows, ROW_TILE), pl.cdiv(HW, LANE_TILE))

    # VMEM budget: double-buffered input + output tiles plus headroom.
    tile_in_bytes = ROW_TILE * LANE_TILE * itemsize
    vmem_need = 4 * tile_in_bytes + (4 << 20)
    vmem_limit = int(min(max(vmem_need, 16 << 20), 48 << 20))

    cost = pl.CostEstimate(
        flops=3 * rows * HW,
        transcendentals=0,
        bytes_accessed=2 * rows * HW * itemsize + 2 * rows * jnp.dtype(param_dtype).itemsize,
    )

    out = pl.pallas_call(
        _fused_bn_relu_kernel,
        out_shape=jax.ShapeDtypeStruct((rows, HW), x.dtype),
        grid=grid,
        in_specs=[
            pl.BlockSpec((ROW_TILE, LANE_TILE), lambda i, j: (i, j)),
            pl.BlockSpec((ROW_TILE, 1), lambda i, j: (i, 0)),
            pl.BlockSpec((ROW_TILE, 1), lambda i, j: (i, 0)),
        ],
        out_specs=pl.BlockSpec((ROW_TILE, LANE_TILE), lambda i, j: (i, j)),
        compiler_params=pltpu.CompilerParams(
            dimension_semantics=("parallel", "parallel"),
            vmem_limit_bytes=vmem_limit,
        ),
        cost_estimate=cost,
    )(x2, scale_rows, shift_rows)

    return out.reshape(N, C, H, W)


class FusedBatchNormReLU:
    """JAX mirror of the PyTorch module (inference path)."""

    def __init__(self, num_features, eps=1e-5, momentum=0.1):
        self.num_features = num_features
        self.eps = eps
        self.momentum = momentum
        # Deterministic init matching nn.Module __init__.
        self.weight = jnp.ones((num_features,), jnp.float32)
        self.bias = jnp.zeros((num_features,), jnp.float32)
        self.running_mean = jnp.zeros((num_features,), jnp.float32)
        self.running_var = jnp.ones((num_features,), jnp.float32)
        # TODO(synk): training-mode F.batch_norm (batch-stat reduction +
        # running-stat update) not implemented; this mirrors the Triton
        # inference fast path only.

    def __call__(self, x):
        return fused_bn_relu(
            x, self.weight, self.bias,
            self.running_mean, self.running_var, self.eps,
        )


def _reference(x, weight, bias, mean, var, eps):
    scale = weight / jnp.sqrt(var + eps)
    shift = bias - mean * scale
    xf = x.astype(jnp.float32)
    y = xf * scale[None, :, None, None] + shift[None, :, None, None]
    return jnp.maximum(y, 0.0)


if __name__ == "__main__":
    key = jax.random.PRNGKey(0)
    k_x, k_w, k_b, k_m, k_v, k_x2 = jax.random.split(key, 6)

    # --- Test 1: small canonical shape, f32 ------------------------------
    N, C, H, W = 2, 4, 16, 16
    x = jax.random.normal(k_x, (N, C, H, W), dtype=jnp.float32)

    mod = FusedBatchNormReLU(C)
    mod.weight = 1.0 + 0.1 * jax.random.normal(k_w, (C,), jnp.float32)
    mod.bias = 0.1 * jax.random.normal(k_b, (C,), jnp.float32)
    mod.running_mean = 0.2 * jax.random.normal(k_m, (C,), jnp.float32)
    mod.running_var = 1.0 + 0.1 * jnp.abs(jax.random.normal(k_v, (C,), jnp.float32))

    out = jax.block_until_ready(mod(x))
    ref = _reference(x, mod.weight, mod.bias, mod.running_mean,
                     mod.running_var, mod.eps)
    assert out.shape == (N, C, H, W)
    assert jnp.allclose(out, ref, atol=1e-5, rtol=1e-5)

    # --- Test 2: bf16 I/O path (bf16-native math) ------------------------
    x_bf16 = x.astype(jnp.bfloat16)
    out_bf16 = jax.block_until_ready(mod(x_bf16))
    ref_bf16 = _reference(x_bf16, mod.weight, mod.bias, mod.running_mean,
                          mod.running_var, mod.eps)
    assert out_bf16.dtype == jnp.bfloat16
    assert jnp.allclose(out_bf16.astype(jnp.float32), ref_bf16,
                        atol=3e-2, rtol=3e-2)

    # --- Test 3: odd shape (no padding; masked row tail, HW % 128 != 0) --
    N2, C2, H2, W2 = 5, 4, 10, 13
    x_odd = jax.random.normal(k_x2, (N2, C2, H2, W2), dtype=jnp.float32)
    mod2 = FusedBatchNormReLU(C2)
    mod2.weight = 1.0 + 0.1 * jax.random.normal(k_w, (C2,), jnp.float32)
    mod2.bias = 0.1 * jax.random.normal(k_b, (C2,), jnp.float32)
    mod2.running_mean = 0.2 * jax.random.normal(k_m, (C2,), jnp.float32)
    mod2.running_var = 1.0 + 0.1 * jnp.abs(jax.random.normal(k_v, (C2,), jnp.float32))
    out_odd = jax.block_until_ready(mod2(x_odd))
    ref_odd = _reference(x_odd, mod2.weight, mod2.bias, mod2.running_mean,
                         mod2.running_var, mod2.eps)
    assert out_odd.shape == (N2, C2, H2, W2)
    assert jnp.allclose(out_odd, ref_odd, atol=1e-5, rtol=1e-5)

    print("KERNEL_OK")
</pallas_src>

<mosaic_0001>
module attributes {stable_mosaic.version = 11 : i64} {
  func.func @_fused_bn_relu_kernel(%arg0: i32, %arg1: i32, %arg2: memref<8x256xf32, #tpu.memory_space<vmem>>, %arg3: memref<8x1xf32, #tpu.memory_space<vmem>>, %arg4: memref<8x1xf32, #tpu.memory_space<vmem>>, %arg5: memref<8x256xf32, #tpu.memory_space<vmem>>) attributes {dimension_semantics = [#tpu.dimension_semantics<parallel>, #tpu.dimension_semantics<parallel>], iteration_bounds = array<i64: 1, 1>, scalar_prefetch = 0 : i64, scratch_operands = 0 : i64, tpu.core_type = #tpu.core_type<tc>, window_params = [{transform_indices = @transform_0, window_bounds = array<i64: 8, 256>}, {transform_indices = @transform_1, window_bounds = array<i64: 8, 1>}, {transform_indices = @transform_2, window_bounds = array<i64: 8, 1>}, {transform_indices = @transform_3, window_bounds = array<i64: 8, 256>}]} {
    %c0 = arith.constant 0 : index
    %c0_0 = arith.constant 0 : index
    %0 = vector.load %arg2[%c0, %c0_0] : memref<8x256xf32, #tpu.memory_space<vmem>>, vector<8x256xf32>
    %c0_1 = arith.constant 0 : index
    %c0_2 = arith.constant 0 : index
    %1 = vector.load %arg3[%c0_1, %c0_2] : memref<8x1xf32, #tpu.memory_space<vmem>>, vector<8x1xf32>
    %2 = vector.broadcast %1 : vector<8x1xf32> to vector<8x256xf32>
    %3 = arith.mulf %0, %2 : vector<8x256xf32>
    %c0_3 = arith.constant 0 : index
    %c0_4 = arith.constant 0 : index
    %4 = vector.load %arg4[%c0_3, %c0_4] : memref<8x1xf32, #tpu.memory_space<vmem>>, vector<8x1xf32>
    %5 = vector.broadcast %4 : vector<8x1xf32> to vector<8x256xf32>
    %6 = arith.addf %3, %5 : vector<8x256xf32>
    %cst = arith.constant 0.000000e+00 : f32
    %7 = vector.broadcast %cst : f32 to vector<8x256xf32>
    %8 = arith.maximumf %6, %7 : vector<8x256xf32>
    %c0_5 = arith.constant 0 : index
    %c0_6 = arith.constant 0 : index
    %9 = vector.load %arg5[%c0_5, %c0_6] : memref<8x256xf32, #tpu.memory_space<vmem>>, vector<8x256xf32>
    tpu.vector_store %arg5[%c0_5, %c0_6], %8 {strides = array<i32>} : memref<8x256xf32, #tpu.memory_space<vmem>>, vector<8x256xf32>,
    return
  }
  func.func @transform_0(%arg0: i32, %arg1: i32) -> (i32, i32) {
    %c0_i32 = arith.constant 0 : i32
    return %arg0, %arg1 : i32, i32
  }
  func.func @transform_1(%arg0: i32, %arg1: i32) -> (i32, i32) {
    %c0_i32 = arith.constant 0 : i32
    %c0_i32_0 = arith.constant 0 : i32
    return %arg0, %c0_i32 : i32, i32
  }
  func.func @transform_2(%arg0: i32, %arg1: i32) -> (i32, i32) {
    %c0_i32 = arith.constant 0 : i32
    %c0_i32_0 = arith.constant 0 : i32
    return %arg0, %c0_i32 : i32, i32
  }
  func.func @transform_3(%arg0: i32, %arg1: i32) -> (i32, i32) {
    %c0_i32 = arith.constant 0 : i32
    return %arg0, %arg1 : i32, i32
  }
}

</mosaic_0001>

<llo_original>
// kernel: tpu_custom_call.1
$region0: #{tpu_custom_call.1}
  #allocation0 [shape = 'u32[]', space=smem, size = 0x4, offset = 0x4, fixed_abs, tag = 'smem constant byte address 0x4 - core index']
  #allocation1 [shape = 'u32[144,128]{1,0:T(1,128)}', space=vmem, size = 0x12000, scoped, tag = 'internal scratch']
  %s0 = inlined_call_operand.vmem [shape: f32[8,256], index: 0, kind: input, shape index: {}]
  %s1 = inlined_call_operand.vmem [shape: f32[8,1], index: 1, kind: input, shape index: {}]
  %s2 = inlined_call_operand.vmem [shape: f32[8,1], index: 2, kind: input, shape index: {}]
  %s3 = inlined_call_operand.hbm [shape: f32[8,256], index: 3, kind: output, shape index: {}]
  %s4 = sld [smem:[#allocation0]]
  $region22: #{tpu_custom_call.1} parent=0
    _
  %s6 = ssub.s32 1, %s4
  %s7 = scalar_select 0, %s6, %s4
  $region1: #{tpu_custom_call.1} parent=0
    #allocation2 [shape = 'u8[8192]{0}', space=vmem, size = 0x2000, scoped, tag = 'output window, operand 0, single buffered']
    #allocation3 [shape = 's32[1]{0}', space=sflag, size = 0x4, scoped, tag = 'scoped memory for tpu_custom_call.1']
    %8 = vsyncpa [#allocation3], 0
    // Predicated region
    $region2: #{tpu_custom_call.1} parent=1 // pred_check
      _
    $region3: #{tpu_custom_call.1} parent=1 // pred_check_branch
      %10 = sbr.rel (0) target = $region5
    $region4: #{tpu_custom_call.1} parent=1 // pred_region
      _
    $region5: #{tpu_custom_call.1} parent=1 // pred_fallthru
      _
    // Predicated region
    $region6: #{tpu_custom_call.1} parent=1 // pred_check
      _
    $region7: #{tpu_custom_call.1} parent=1 // pred_check_branch
      %12 = sbr.rel (0) target = $region9
    $region8: #{tpu_custom_call.1} parent=1 // pred_region
      _
    $region9: #{tpu_custom_call.1} parent=1 // pred_fallthru
      _
    // Predicated region
    $region10: #{tpu_custom_call.1} parent=1 // pred_check
      _
    $region11: #{tpu_custom_call.1} parent=1 // pred_check_branch
      %14 = sbr.rel (0) target = $region13
    $region12: #{tpu_custom_call.1} parent=1 // pred_region
      _
    $region13: #{tpu_custom_call.1} parent=1 // pred_fallthru
      _
    %v15 = vld [vmem:[%s0] sm:$0xff]
    %v16 = vld [vmem:[%s0 + $0x8] sm:$0xff]
    %v17 = vld [vmem:[%s1] sm:$0xff]
    %19 = vset.pattern.permute.xlu0 0
    %20 = vperm.xlu0 %19, %v17
    %v21 = vpop.permute.xlu0 %20
    %v23 = vmul.f32 %v15, %v21
    %v24 = vmul.f32 %v16, %v21
    %v25 = vld [vmem:[%s2] sm:$0xff]
    %27 = vset.pattern.permute.xlu0 0
    %28 = vperm.xlu0 %27, %v25
    %v29 = vpop.permute.xlu0 %28
    %v31 = vadd.f32 %v23, %v29
    %v32 = vadd.f32 %v24, %v29
    %v33 = vmax.f32 %v31, 0.0
    %v34 = vmax.f32 %v32, 0.0
    %35 = vst [vmem:[#allocation2] sm:$0xff] %v33
    %36 = vst [vmem:[#allocation2 + $0x8] sm:$0xff] %v34
    // Predicated region
    $region14: #{tpu_custom_call.1} parent=1 // pred_check
      _
    $region15: #{tpu_custom_call.1} parent=1 // pred_check_branch
      %38 = sbr.rel (0) target = $region17
    $region16: #{tpu_custom_call.1} parent=1 // pred_region
      %s40 = ssub.s32 256, 256
      %41 = vsyncadd [#allocation3], %s40
      %s43 = sshll.u32 [#allocation2], 4
      %s44 = int_to_ptr.vmem [resolvable:$true] %s43
      %46 = dma.vmem_to_hbm [thread:$0]  %s44, 256, %s3, [#allocation3]
    $region17: #{tpu_custom_call.1} parent=1 // pred_fallthru
      _
    // Predicated region
    $region18: #{tpu_custom_call.1} parent=1 // pred_check
      _
    $region19: #{tpu_custom_call.1} parent=1 // pred_check_branch
      %48 = sbr.rel (0) target = $region21
    $region20: #{tpu_custom_call.1} parent=1 // pred_region
      %49 = dma.done [#allocation3], 256
    $region21: #{tpu_custom_call.1} parent=1 // pred_fallthru
      _
    %50 = vsyncpa [#allocation3], 1

</llo_original>
